<compile_context>
chip_gen: v6e
topology: v6e:2x2x1
jax: 0.10.0
libtpu: 0.0.40
codegen_flags: <defaults>
</compile_context>

<pallas_src>
import jax
import jax.numpy as jnp
from jax.experimental import pallas as pl
from jax.experimental.pallas import tpu as pltpu


def _round_up(n, m):
    return ((n + m - 1) // m) * m


def _action_value_head_kernel(
    x_ref,       # (TB, F)     features, on-wire dtype (f32)
    a_ref,       # (TB, A)     encoded action vectors, on-wire dtype (f32)
    w1_ref,      # (A, H)      action_enc Linear1 weight (transposed vs torch), mxu dtype
    b1_ref,      # (1, H)      f32
    w2m_ref,     # (H, F)      action_enc Linear2 weight, multiplicative half, mxu dtype
    b2m_ref,     # (1, F)      f32
    w3t_ref,     # (O_pad, F)  final Linear weight, transposed + sublane-padded, mxu dtype
    w2a3t_ref,   # (O_pad, H)  folded additive branch (w2a @ w3)^T, padded, mxu dtype
    b2a3t_ref,   # (O_pad, 1)  folded bias (b2a @ w3 + b3)^T, padded, f32
    qT_ref,      # (O, TB)     output block: q transposed, only the real O rows
):
    mxu_dtype = w1_ref.dtype

    # Cast activations to the MXU dtype *inside* the kernel (they stay f32 on
    # the HBM wire; no extra wrapper-side pass over the dominant stream).
    a_m = a_ref[...].astype(mxu_dtype)

    # Action encoder: Linear -> Tanh.  (MXU + EUP; f32 accumulation.)
    h = jnp.tanh(
        jnp.dot(a_m, w1_ref[...], preferred_element_type=jnp.float32)
        + b1_ref[...]
    )                                                     # (TB, H) f32
    h_m = h.astype(mxu_dtype)

    # Multiplicative half of the second Linear; the additive half is folded
    # into w2a3t / b2a3t in the wrapper.
    ac_mul = (
        jnp.dot(h_m, w2m_ref[...], preferred_element_type=jnp.float32)
        + b2m_ref[...]
    )                                                     # (TB, F) f32

    # Elementwise path deliberately in f32 (v5e has no bf16 VPU).
    z = x_ref[...].astype(jnp.float32) * ac_mul           # (TB, F) f32
    z_m = z.astype(mxu_dtype)

    # q^T = w3^T z^T + (w2a w3)^T h^T + (b2a w3 + b3)^T    -> (O_pad, TB)
    # Transposed formulation keeps the output lane-dense (batch on the lane axis).
    qT = (
        jnp.einsum("of,bf->ob", w3t_ref[...], z_m,
                   preferred_element_type=jnp.float32)
        + jnp.einsum("oh,bh->ob", w2a3t_ref[...], h_m,
                     preferred_element_type=jnp.float32)
        + b2a3t_ref[...]
    )

    # Store only the real O rows (HBM output is un-padded, minimal writeback).
    o = qT_ref.shape[0]
    qT_ref[...] = qT[:o, :].astype(qT_ref.dtype)


def action_value_head(x, actions_vec, params, *, tile_bytes=2 * 1024 * 1024,
                      mxu_dtype=jnp.float32,
                      vmem_limit_bytes=48 * 1024 * 1024):
    """Fused ActionValueHead forward pass.

    x:           (B, in_features) float32
    actions_vec: (B, pd_input_len) float32   (already pd.to_inputs-encoded)
    params:      dict with w1 (A,H), b1 (1,H), w2 (H,2F), b2 (1,2F), w3 (F,O), b3 (1,O)
    tile_bytes:  target HBM bytes of x/actions streamed per grid step (~1-4 MiB)
    mxu_dtype:   dtype of MXU operands (jnp.bfloat16 recommended on v6e/v7x)
    returns q:   (B, num_out) float32
    """
    B, F = x.shape
    Ba, A = actions_vec.shape
    assert Ba == B
    w1, b1 = params["w1"], params["b1"]
    w2, b2 = params["w2"], params["b2"]
    w3, b3 = params["w3"], params["b3"]
    H = w1.shape[1]
    O = w3.shape[1]
    assert w2.shape == (H, 2 * F)

    # .chunk(2, -1): first half -> ac_add, second half -> ac_mul
    w2a, w2m = w2[:, :F], w2[:, F:]
    b2a, b2m = b2[:, :F], b2[:, F:]

    # Fold the additive branch through the final Linear (exact up to f32 order):
    #   q = (x*ac_mul + ac_add) @ w3 + b3
    #     = (x*ac_mul) @ w3 + h @ (w2a @ w3) + (b2a @ w3 + b3)
    w2a3 = w2a @ w3            # (H, O)  tiny, one-time
    b2a3 = b2a @ w3 + b3       # (1, O)

    # O padded only for the in-kernel weights/compute (sublane-friendly MXU M);
    # the HBM output keeps exactly O rows.
    O_pad = max(8, _round_up(O, 8))

    def pad_o_t(m):            # (X, O) -> (O_pad, X), zero-padded rows
        return jnp.pad(m.T, ((0, O_pad - O), (0, 0)))

    w3t = pad_o_t(w3)          # (O_pad, F)
    w2a3t = pad_o_t(w2a3)      # (O_pad, H)
    b2a3t = pad_o_t(b2a3)      # (O_pad, 1)

    # ---- Batch tile: byte-budgeted, no wrapper-side padding of x/actions. ----
    in_itemsize = jnp.dtype(x.dtype).itemsize
    mxu_itemsize = jnp.dtype(mxu_dtype).itemsize
    bytes_per_row_hbm = (F + A) * in_itemsize
    bytes_per_row_vmem = (2 * (F + A) * in_itemsize     # double-buffered input tiles
                          + (H + 2 * F) * 4             # h, ac_mul, z in f32
                          + (H + F) * mxu_itemsize      # MXU-dtype copies of h, z
                          + 2 * O_pad * 4)              # output double buffer
    vmem_tile_budget = 24 * 1024 * 1024                 # stays < 48 MiB limit (v7x-safe)
    tb = min(max(tile_bytes, bytes_per_row_hbm) // bytes_per_row_hbm,
             max(1, vmem_tile_budget // bytes_per_row_vmem))
    TB = max(128, (tb // 128) * 128)                    # multiple of 128 (output lane dim)
    if TB >= B:
        # Whole batch fits in one tile: split in two so the "parallel" batch axis
        # spans both TensorCores on v7x (only when the batch is big enough);
        # otherwise a single exact-size tile (block dim == full dim is legal).
        TB = _round_up((B + 1) // 2, 128) if B >= 256 else B
    num_tiles = pl.cdiv(B, TB)    # ragged last block is masked by Pallas

    # Weights cast once in the wrapper (tiny; constant index_maps keep them
    # VMEM-resident across grid steps). Activations stay on the wire as-is.
    w1_k = w1.astype(mxu_dtype)
    w2m_k = w2m.astype(mxu_dtype)
    w3t_k = w3t.astype(mxu_dtype)
    w2a3t_k = w2a3t.astype(mxu_dtype)
    b1_k = b1.astype(jnp.float32)
    b2m_k = b2m.astype(jnp.float32)
    b2a3t_k = b2a3t.astype(jnp.float32)

    def const_spec(shape):     # parameters: same block every grid step -> resident
        return pl.BlockSpec(shape, lambda i: (0, 0))

    in_specs = [
        pl.BlockSpec((TB, F), lambda i: (i, 0)),   # x tile
        pl.BlockSpec((TB, A), lambda i: (i, 0)),   # actions tile
        const_spec((A, H)),                        # w1
        const_spec((1, H)),                        # b1
        const_spec((H, F)),                        # w2m
        const_spec((1, F)),                        # b2m
        const_spec((O_pad, F)),                    # w3t
        const_spec((O_pad, H)),                    # w2a3t
        const_spec((O_pad, 1)),                    # b2a3t
    ]
    out_spec = pl.BlockSpec((O, TB), lambda i: (0, i))   # lane-dense, un-padded rows

    cost = pl.CostEstimate(
        flops=2 * B * (A * H + H * F + F * O_pad + H * O_pad),
        transcendentals=B * H,
        bytes_accessed=(B * (F + A) * in_itemsize                        # x, actions
                        + (A * H + H * F + O_pad * (F + H)) * mxu_itemsize
                        + (H + F + O_pad) * 4                            # biases
                        + O * B * 4),                                    # output
    )

    qT = pl.pallas_call(
        _action_value_head_kernel,
        out_shape=jax.ShapeDtypeStruct((O, B), jnp.float32),
        grid=(num_tiles,),
        in_specs=in_specs,
        out_specs=out_spec,
        compiler_params=pltpu.CompilerParams(
            dimension_semantics=("parallel",),     # batch tiles independent -> megacore
            vmem_limit_bytes=vmem_limit_bytes,     # 48 MiB: safe on v7x (64 MiB physical)
        ),
        cost_estimate=cost,
    )(x, actions_vec, w1_k, b1_k, w2m_k, b2m_k, w3t_k, w2a3t_k, b2a3t_k)

    # Tiny (O, B) -> (B, O) transpose back to the module's layout.
    return qT.T


def init_params(key, in_features, pd_input_len, num_out=1, hidden=128):
    """Deterministic synthetic parameter init (shapes match the torch module)."""
    ks = jax.random.split(key, 6)
    F, A, H, O = in_features, pd_input_len, hidden, num_out

    # action_enc[0]: Linear(A, H)
    w1 = jax.random.normal(ks[0], (A, H), jnp.float32) * 0.1
    b1 = jax.random.normal(ks[1], (1, H), jnp.float32) * 0.01
    # action_enc[2]: Linear(H, 2F); .chunk(2,-1) -> first F cols = add, last F = mul
    w2 = jax.random.normal(ks[2], (H, 2 * F), jnp.float32) * 0.1
    b2 = jax.random.normal(ks[3], (1, 2 * F), jnp.float32) * 0.01
    # self.linear: Linear(F, O); reset_weights() -> normalized-column init, bias 0
    w3 = jax.random.normal(ks[4], (F, O), jnp.float32)
    w3 = w3 / jnp.sqrt(jnp.sum(w3 * w3, axis=0, keepdims=True))
    b3 = jnp.zeros((1, O), jnp.float32)

    return {"w1": w1, "b1": b1, "w2": w2, "b2": b2, "w3": w3, "b3": b3}


def _reference(x, a, p):
    """Pure-JAX reference implementing the original (un-folded) module math."""
    F = x.shape[-1]
    h = jnp.tanh(a @ p["w1"] + p["b1"])
    enc = h @ p["w2"] + p["b2"]
    ac_add, ac_mul = enc[:, :F], enc[:, F:]
    return (x * ac_mul + ac_add) @ p["w3"] + p["b3"]


if __name__ == "__main__":
    key = jax.random.PRNGKey(0)
    k_x, k_a, k_p, k_x2, k_a2 = jax.random.split(key, 5)

    # Test 1: small canonical shapes (single tile, block == full dims), exact f32.
    B, F, A, O = 8, 32, 8, 1          # batch, in_features, pd.input_vector_len, num_out
    params = init_params(k_p, in_features=F, pd_input_len=A, num_out=O)
    x = jax.random.normal(k_x, (B, F), jnp.float32)
    actions_vec = jax.random.normal(k_a, (B, A), jnp.float32)   # pd.to_inputs(actions)

    q = jax.block_until_ready(action_value_head(x, actions_vec, params))
    q_ref = _reference(x, actions_vec, params)
    assert q.shape == (B, O), q.shape
    assert jnp.allclose(q, q_ref, atol=1e-3, rtol=1e-3), float(jnp.max(jnp.abs(q - q_ref)))

    # Test 2: B not tile-aligned, megacore split path (2 tiles, ragged last block), f32.
    B2 = 300
    x2 = jax.random.normal(k_x2, (B2, F), jnp.float32)
    a2 = jax.random.normal(k_a2, (B2, A), jnp.float32)
    q2 = jax.block_until_ready(action_value_head(x2, a2, params))
    q2_ref = _reference(x2, a2, params)
    assert q2.shape == (B2, O), q2.shape
    assert jnp.allclose(q2, q2_ref, atol=1e-3, rtol=1e-3), float(jnp.max(jnp.abs(q2 - q2_ref)))

    # Test 3: small tile budget -> budget-driven multi-tile grid with ragged tail, f32.
    q3 = jax.block_until_ready(
        action_value_head(x2, a2, params, tile_bytes=128 * (F + A) * 4))
    assert jnp.allclose(q3, q2_ref, atol=1e-3, rtol=1e-3), float(jnp.max(jnp.abs(q3 - q2_ref)))

    # Test 4: bf16 MXU operands (recommended on v6e/v7x), looser tolerance.
    q4 = jax.block_until_ready(
        action_value_head(x2, a2, params, mxu_dtype=jnp.bfloat16))
    assert jnp.allclose(q4, q2_ref, atol=5e-2, rtol=5e-2), \
        float(jnp.max(jnp.abs(q4 - q2_ref)))

    print("KERNEL_OK")
</pallas_src>

<mosaic_0001>
module attributes {stable_mosaic.version = 11 : i64} {
  func.func @_action_value_head_kernel(%arg0: i32, %arg1: memref<8x32xf32, #tpu.memory_space<vmem>>, %arg2: memref<8x8xf32, #tpu.memory_space<vmem>>, %arg3: memref<8x128xf32, #tpu.memory_space<vmem>>, %arg4: memref<1x128xf32, #tpu.memory_space<vmem>>, %arg5: memref<128x32xf32, #tpu.memory_space<vmem>>, %arg6: memref<1x32xf32, #tpu.memory_space<vmem>>, %arg7: memref<8x32xf32, #tpu.memory_space<vmem>>, %arg8: memref<8x128xf32, #tpu.memory_space<vmem>>, %arg9: memref<8x1xf32, #tpu.memory_space<vmem>>, %arg10: memref<1x8xf32, #tpu.memory_space<vmem>>) attributes {dimension_semantics = [#tpu.dimension_semantics<parallel>], iteration_bounds = array<i64: 1>, scalar_prefetch = 0 : i64, scratch_operands = 0 : i64, tpu.core_type = #tpu.core_type<tc>, window_params = [{transform_indices = @transform_0, window_bounds = array<i64: 8, 32>}, {transform_indices = @transform_1, window_bounds = array<i64: 8, 8>}, {pipeline_mode = #tpu.pipeline_mode<synchronous>, transform_indices = @transform_2, window_bounds = array<i64: 8, 128>}, {pipeline_mode = #tpu.pipeline_mode<synchronous>, transform_indices = @transform_3, window_bounds = array<i64: 1, 128>}, {pipeline_mode = #tpu.pipeline_mode<synchronous>, transform_indices = @transform_4, window_bounds = array<i64: 128, 32>}, {pipeline_mode = #tpu.pipeline_mode<synchronous>, transform_indices = @transform_5, window_bounds = array<i64: 1, 32>}, {pipeline_mode = #tpu.pipeline_mode<synchronous>, transform_indices = @transform_6, window_bounds = array<i64: 8, 32>}, {pipeline_mode = #tpu.pipeline_mode<synchronous>, transform_indices = @transform_7, window_bounds = array<i64: 8, 128>}, {pipeline_mode = #tpu.pipeline_mode<synchronous>, transform_indices = @transform_8, window_bounds = array<i64: 8, 1>}, {transform_indices = @transform_9, window_bounds = array<i64: 1, 8>}]} {
    %c0 = arith.constant 0 : index
    %c0_0 = arith.constant 0 : index
    %0 = vector.load %arg2[%c0, %c0_0] : memref<8x8xf32, #tpu.memory_space<vmem>>, vector<8x8xf32>
    %c0_1 = arith.constant 0 : index
    %c0_2 = arith.constant 0 : index
    %1 = vector.load %arg3[%c0_1, %c0_2] : memref<8x128xf32, #tpu.memory_space<vmem>>, vector<8x128xf32>
    %cst = arith.constant dense<0.000000e+00> : vector<8x128xf32>
    %2 = tpu.matmul %0, %1, %cst {dimension_numbers = #tpu.dot_dimension_numbers<[1], [0], [0], [1], [0, 0, 1, 1], [], []>} : vector<8x8xf32>, vector<8x128xf32>, vector<8x128xf32> -> vector<8x128xf32>
    %c0_3 = arith.constant 0 : index
    %c0_4 = arith.constant 0 : index
    %3 = vector.load %arg4[%c0_3, %c0_4] : memref<1x128xf32, #tpu.memory_space<vmem>>, vector<1x128xf32>
    %4 = vector.broadcast %3 : vector<1x128xf32> to vector<8x128xf32>
    %5 = arith.addf %2, %4 : vector<8x128xf32>
    %6 = math.tanh %5 : vector<8x128xf32>
    %c0_5 = arith.constant 0 : index
    %c0_6 = arith.constant 0 : index
    %7 = vector.load %arg5[%c0_5, %c0_6] : memref<128x32xf32, #tpu.memory_space<vmem>>, vector<128x32xf32>
    %cst_7 = arith.constant dense<0.000000e+00> : vector<8x32xf32>
    %8 = tpu.matmul %6, %7, %cst_7 {dimension_numbers = #tpu.dot_dimension_numbers<[1], [0], [0], [1], [0, 0, 1, 1], [], []>} : vector<8x128xf32>, vector<128x32xf32>, vector<8x32xf32> -> vector<8x32xf32>
    %c0_8 = arith.constant 0 : index
    %c0_9 = arith.constant 0 : index
    %9 = vector.load %arg6[%c0_8, %c0_9] : memref<1x32xf32, #tpu.memory_space<vmem>>, vector<1x32xf32>
    %10 = vector.broadcast %9 : vector<1x32xf32> to vector<8x32xf32>
    %11 = arith.addf %8, %10 : vector<8x32xf32>
    %c0_10 = arith.constant 0 : index
    %c0_11 = arith.constant 0 : index
    %12 = vector.load %arg1[%c0_10, %c0_11] : memref<8x32xf32, #tpu.memory_space<vmem>>, vector<8x32xf32>
    %13 = arith.mulf %12, %11 : vector<8x32xf32>
    %c0_12 = arith.constant 0 : index
    %c0_13 = arith.constant 0 : index
    %14 = vector.load %arg7[%c0_12, %c0_13] : memref<8x32xf32, #tpu.memory_space<vmem>>, vector<8x32xf32>
    "tpu.trace_start"() <{level = 10 : i32, message = "of,bf->ob"}> : () -> ()
    %cst_14 = arith.constant dense<0.000000e+00> : vector<8x8xf32>
    %15 = tpu.matmul %14, %13, %cst_14 {dimension_numbers = #tpu.dot_dimension_numbers<[1], [1], [0], [0], [0, 0, 1, 0], [], []>} : vector<8x32xf32>, vector<8x32xf32>, vector<8x8xf32> -> vector<8x8xf32>
    "tpu.trace_stop"() : () -> ()
    %c0_15 = arith.constant 0 : index
    %c0_16 = arith.constant 0 : index
    %16 = vector.load %arg8[%c0_15, %c0_16] : memref<8x128xf32, #tpu.memory_space<vmem>>, vector<8x128xf32>
    "tpu.trace_start"() <{level = 10 : i32, message = "oh,bh->ob"}> : () -> ()
    %cst_17 = arith.constant dense<0.000000e+00> : vector<8x8xf32>
    %17 = tpu.matmul %16, %6, %cst_17 {dimension_numbers = #tpu.dot_dimension_numbers<[1], [1], [0], [0], [0, 0, 1, 0], [], []>} : vector<8x128xf32>, vector<8x128xf32>, vector<8x8xf32> -> vector<8x8xf32>
    "tpu.trace_stop"() : () -> ()
    %18 = arith.addf %15, %17 : vector<8x8xf32>
    %c0_18 = arith.constant 0 : index
    %c0_19 = arith.constant 0 : index
    %19 = vector.load %arg9[%c0_18, %c0_19] : memref<8x1xf32, #tpu.memory_space<vmem>>, vector<8x1xf32>
    %20 = vector.broadcast %19 : vector<8x1xf32> to vector<8x8xf32>
    %21 = arith.addf %18, %20 : vector<8x8xf32>
    %22 = vector.extract_strided_slice %21 {offsets = [0, 0], sizes = [1, 8], strides = [1, 1]} : vector<8x8xf32> to vector<1x8xf32>
    %c0_20 = arith.constant 0 : index
    %c0_21 = arith.constant 0 : index
    %23 = vector.load %arg10[%c0_20, %c0_21] : memref<1x8xf32, #tpu.memory_space<vmem>>, vector<1x8xf32>
    tpu.vector_store %arg10[%c0_20, %c0_21], %22 {strides = array<i32>} : memref<1x8xf32, #tpu.memory_space<vmem>>, vector<1x8xf32>,
    return
  }
  func.func @transform_0(%arg0: i32) -> (i32, i32) {
    %c0_i32 = arith.constant 0 : i32
    %c0_i32_0 = arith.constant 0 : i32
    return %arg0, %c0_i32 : i32, i32
  }
  func.func @transform_1(%arg0: i32) -> (i32, i32) {
    %c0_i32 = arith.constant 0 : i32
    %c0_i32_0 = arith.constant 0 : i32
    return %arg0, %c0_i32 : i32, i32
  }
  func.func @transform_2(%arg0: i32) -> (i32, i32) {
    %c0_i32 = arith.constant 0 : i32
    %c0_i32_0 = arith.constant 0 : i32
    %c0_i32_1 = arith.constant 0 : i32
    return %c0_i32, %c0_i32_0 : i32, i32
  }
  func.func @transform_3(%arg0: i32) -> (i32, i32) {
    %c0_i32 = arith.constant 0 : i32
    %c0_i32_0 = arith.constant 0 : i32
    %c0_i32_1 = arith.constant 0 : i32
    return %c0_i32, %c0_i32_0 : i32, i32
  }
  func.func @transform_4(%arg0: i32) -> (i32, i32) {
    %c0_i32 = arith.constant 0 : i32
    %c0_i32_0 = arith.constant 0 : i32
    %c0_i32_1 = arith.constant 0 : i32
    return %c0_i32, %c0_i32_0 : i32, i32
  }
  func.func @transform_5(%arg0: i32) -> (i32, i32) {
    %c0_i32 = arith.constant 0 : i32
    %c0_i32_0 = arith.constant 0 : i32
    %c0_i32_1 = arith.constant 0 : i32
    return %c0_i32, %c0_i32_0 : i32, i32
  }
  func.func @transform_6(%arg0: i32) -> (i32, i32) {
    %c0_i32 = arith.constant 0 : i32
    %c0_i32_0 = arith.constant 0 : i32
    %c0_i32_1 = arith.constant 0 : i32
    return %c0_i32, %c0_i32_0 : i32, i32
  }
  func.func @transform_7(%arg0: i32) -> (i32, i32) {
    %c0_i32 = arith.constant 0 : i32
    %c0_i32_0 = arith.constant 0 : i32
    %c0_i32_1 = arith.constant 0 : i32
    return %c0_i32, %c0_i32_0 : i32, i32
  }
  func.func @transform_8(%arg0: i32) -> (i32, i32) {
    %c0_i32 = arith.constant 0 : i32
    %c0_i32_0 = arith.constant 0 : i32
    %c0_i32_1 = arith.constant 0 : i32
    return %c0_i32, %c0_i32_0 : i32, i32
  }
  func.func @transform_9(%arg0: i32) -> (i32, i32) {
    %c0_i32 = arith.constant 0 : i32
    %c0_i32_0 = arith.constant 0 : i32
    return %c0_i32, %arg0 : i32, i32
  }
}

</mosaic_0001>

<llo_original>
// kernel: tpu_custom_call.1
$region0: #{tpu_custom_call.1}
  #allocation0 [shape = 'u32[]', space=smem, size = 0x4, offset = 0x4, fixed_abs, tag = 'smem constant byte address 0x4 - core index']
  #allocation1 [shape = 'u32[144,128]{1,0:T(1,128)}', space=vmem, size = 0x12000, scoped, tag = 'internal scratch']
  %s0 = inlined_call_operand.vmem [shape: f32[8,32], index: 0, kind: input, shape index: {}]
  %s1 = inlined_call_operand.vmem [shape: f32[8,8], index: 1, kind: input, shape index: {}]
  %s2 = inlined_call_operand.vmem [shape: f32[8,128], index: 2, kind: input, shape index: {}]
  %s3 = inlined_call_operand.vmem [shape: f32[1,128], index: 3, kind: input, shape index: {}]
  %s4 = inlined_call_operand.vmem [shape: f32[128,32], index: 4, kind: input, shape index: {}]
  %s5 = inlined_call_operand.vmem [shape: f32[1,32], index: 5, kind: input, shape index: {}]
  %s6 = inlined_call_operand.vmem [shape: f32[8,32], index: 6, kind: input, shape index: {}]
  %s7 = inlined_call_operand.vmem [shape: f32[8,128], index: 7, kind: input, shape index: {}]
  %s8 = inlined_call_operand.vmem [shape: f32[8,1], index: 8, kind: input, shape index: {}]
  %s9 = inlined_call_operand.hbm [shape: f32[1,8], index: 9, kind: output, shape index: {}]
  %s10 = sld [smem:[#allocation0]]
  $region46: #{tpu_custom_call.1} parent=0
    _
  %s12 = ssub.s32 1, %s10
  %s13 = scalar_select 0, %s12, %s10
  $region1: #{tpu_custom_call.1} parent=0
    #allocation2 [shape = 'u8[512]{0}', space=vmem, size = 0x400, scoped, tag = 'output window, operand 0, single buffered']
    #allocation3 [shape = 's32[1]{0}', space=sflag, size = 0x4, scoped, tag = 'scoped memory for tpu_custom_call.1']
    %14 = vsyncpa [#allocation3], 0
    // Predicated region
    $region2: #{tpu_custom_call.1} parent=1 // pred_check
      _
    $region3: #{tpu_custom_call.1} parent=1 // pred_check_branch
      %16 = sbr.rel (0) target = $region5
    $region4: #{tpu_custom_call.1} parent=1 // pred_region
      _
    $region5: #{tpu_custom_call.1} parent=1 // pred_fallthru
      _
    // Predicated region
    $region6: #{tpu_custom_call.1} parent=1 // pred_check
      _
    $region7: #{tpu_custom_call.1} parent=1 // pred_check_branch
      %18 = sbr.rel (0) target = $region9
    $region8: #{tpu_custom_call.1} parent=1 // pred_region
      _
    $region9: #{tpu_custom_call.1} parent=1 // pred_fallthru
      _
    // Predicated region
    $region10: #{tpu_custom_call.1} parent=1 // pred_check
      _
    $region11: #{tpu_custom_call.1} parent=1 // pred_check_branch
      %20 = sbr.rel (0) target = $region13
    $region12: #{tpu_custom_call.1} parent=1 // pred_region
      _
    $region13: #{tpu_custom_call.1} parent=1 // pred_fallthru
      _
    // Predicated region
    $region14: #{tpu_custom_call.1} parent=1 // pred_check
      _
    $region15: #{tpu_custom_call.1} parent=1 // pred_check_branch
      %22 = sbr.rel (0) target = $region17
    $region16: #{tpu_custom_call.1} parent=1 // pred_region
      _
    $region17: #{tpu_custom_call.1} parent=1 // pred_fallthru
      _
    // Predicated region
    $region18: #{tpu_custom_call.1} parent=1 // pred_check
      _
    $region19: #{tpu_custom_call.1} parent=1 // pred_check_branch
      %24 = sbr.rel (0) target = $region21
    $region20: #{tpu_custom_call.1} parent=1 // pred_region
      _
    $region21: #{tpu_custom_call.1} parent=1 // pred_fallthru
      _
    // Predicated region
    $region22: #{tpu_custom_call.1} parent=1 // pred_check
      _
    $region23: #{tpu_custom_call.1} parent=1 // pred_check_branch
      %26 = sbr.rel (0) target = $region25
    $region24: #{tpu_custom_call.1} parent=1 // pred_region
      _
    $region25: #{tpu_custom_call.1} parent=1 // pred_fallthru
      _
    // Predicated region
    $region26: #{tpu_custom_call.1} parent=1 // pred_check
      _
    $region27: #{tpu_custom_call.1} parent=1 // pred_check_branch
      %28 = sbr.rel (0) target = $region29
    $region28: #{tpu_custom_call.1} parent=1 // pred_region
      _
    $region29: #{tpu_custom_call.1} parent=1 // pred_fallthru
      _
    // Predicated region
    $region30: #{tpu_custom_call.1} parent=1 // pred_check
      _
    $region31: #{tpu_custom_call.1} parent=1 // pred_check_branch
      %30 = sbr.rel (0) target = $region33
    $region32: #{tpu_custom_call.1} parent=1 // pred_region
      _
    $region33: #{tpu_custom_call.1} parent=1 // pred_fallthru
      _
    // Predicated region
    $region34: #{tpu_custom_call.1} parent=1 // pred_check
      _
    $region35: #{tpu_custom_call.1} parent=1 // pred_check_branch
      %32 = sbr.rel (0) target = $region37
    $region36: #{tpu_custom_call.1} parent=1 // pred_region
      _
    $region37: #{tpu_custom_call.1} parent=1 // pred_fallthru
      _
    %v33 = vld [vmem:[%s1] sm:$0xff]
    %v34 = vld [vmem:[%s2] sm:$0xff]
    %v35 = vld [vmem:[%s3] sm:$0x1]
    %v37 = vlaneseq
    %v38 = vshrl.u32 %v37, 7
    %v39 = vsub.s32 0, %v38
    %v40 = vrot.slane %v35, %v39
    %vm42 = vcmask 64512
    %v44 = vsel %vm42, %v33, 0
    %46 = vmatprep.subr.mxu0 0.0
    %47 = vmatpush1.msra.mxu0 0.0
    %48 = vmatprep.subr.mxu0 0.0
    %49 = vmatpush1.msra.mxu0 0.0
    %50 = vmatprep.subr.mxu0 0.0
    %51 = vmatpush1.msra.mxu0 0.0
    %52 = vmatprep.subr.mxu0 0.0
    %53 = vmatpush1.msra.mxu0 0.0
    %54 = vmatprep.subr.mxu0 0.0
    %55 = vmatpush1.msra.mxu0 0.0
    %56 = vmatprep.subr.mxu0 0.0
    %57 = vmatpush1.msra.mxu0 0.0
    %58 = vmatprep.subr.mxu0 0.0
    %59 = vmatpush1.msra.mxu0 0.0
    %60 = vmatprep.subr.mxu0 0.0
    %61 = vmatpush1.msra.mxu0 0.0
    %62 = vmatprep.subr.mxu0 0.0
    %63 = vmatpush1.msra.mxu0 0.0
    %64 = vmatprep.subr.mxu0 0.0
    %65 = vmatpush1.msra.mxu0 0.0
    %66 = vmatprep.subr.mxu0 0.0
    %67 = vmatpush1.msra.mxu0 0.0
    %68 = vmatprep.subr.mxu0 0.0
    %69 = vmatpush1.msra.mxu0 0.0
    %70 = vmatprep.subr.mxu0 0.0
    %71 = vmatpush1.msra.mxu0 0.0
    %72 = vmatprep.subr.mxu0 0.0
    %73 = vmatpush1.msra.mxu0 0.0
    %74 = vmatprep.subr.mxu0 0.0
    %75 = vmatpush1.msra.mxu0 0.0
    %76 = vmatprep.subr.mxu0 0.0
    %77 = vmatpush1.msra.mxu0 %v34
    %78 = vmatprep.subr.mxu0 0.0
    %79 = vmatpush2.msra.mxu0 0.0
    %80 = vmatprep.subr.mxu0 0.0
    %81 = vmatpush2.msra.mxu0 0.0
    %82 = vmatprep.subr.mxu0 0.0
    %83 = vmatpush2.msra.mxu0 0.0
    %84 = vmatprep.subr.mxu0 0.0
    %85 = vmatpush2.msra.mxu0 0.0
    %86 = vmatprep.subr.mxu0 0.0
    %87 = vmatpush2.msra.mxu0 0.0
    %88 = vmatprep.subr.mxu0 0.0
    %89 = vmatpush2.msra.mxu0 0.0
    %90 = vmatprep.subr.mxu0 0.0
    %91 = vmatpush2.msra.mxu0 0.0
    %92 = vmatprep.subr.mxu0 0.0
    %93 = vmatpush2.msra.mxu0 0.0
    %94 = vmatprep.subr.mxu0 0.0
    %95 = vmatpush2.msra.mxu0 0.0
    %96 = vmatprep.subr.mxu0 0.0
    %97 = vmatpush2.msra.mxu0 0.0
    %98 = vmatprep.subr.mxu0 0.0
    %99 = vmatpush2.msra.mxu0 0.0
    %100 = vmatprep.subr.mxu0 0.0
    %101 = vmatpush2.msra.mxu0 0.0
    %102 = vmatprep.subr.mxu0 0.0
    %103 = vmatpush2.msra.mxu0 0.0
    %104 = vmatprep.subr.mxu0 0.0
    %105 = vmatpush2.msra.mxu0 0.0
    %106 = vmatprep.subr.mxu0 0.0
    %107 = vmatpush2.msra.mxu0 0.0
    %108 = vmatprep.subr.mxu0 0.0
    %109 = vmatpush2.msra.mxu0 0.0
    %110 = vmatprep.mubr.f32.mxu0 0.0
    %111 = vmatmul.mubr.f32.gmra.mxu0 %v44
    %v112 = vpop.f32.mrf.mxu0
    %v113 = vadd.f32 %v40, %v112
    %v114 = vpop.f32.mrf.mxu0
    %115 = vdwg.mxu0
    %v116 = vtanh.pop %v113
    %v117 = vld [vmem:[%s4] sm:$0xff]
    %v118 = vld [vmem:[%s4 + $0x8] sm:$0xff]
    %v119 = vld [vmem:[%s4 + $0x10] sm:$0xff]
    %v120 = vld [vmem:[%s4 + $0x18] sm:$0xff]
    %v121 = vld [vmem:[%s4 + $0x20] sm:$0xff]
    %v122 = vld [vmem:[%s4 + $0x28] sm:$0xff]
    %v123 = vld [vmem:[%s4 + $0x30] sm:$0xff]
    %v124 = vld [vmem:[%s4 + $0x38] sm:$0xff]
    %v125 = vld [vmem:[%s4 + $0x40] sm:$0xff]
    %v126 = vld [vmem:[%s4 + $0x48] sm:$0xff]
    %v127 = vld [vmem:[%s4 + $0x50] sm:$0xff]
    %v128 = vld [vmem:[%s4 + $0x58] sm:$0xff]
    %v129 = vld [vmem:[%s4 + $0x60] sm:$0xff]
    %v130 = vld [vmem:[%s4 + $0x68] sm:$0xff]
    %v131 = vld [vmem:[%s4 + $0x70] sm:$0xff]
    %v132 = vld [vmem:[%s4 + $0x78] sm:$0xff]
    %v133 = vld [vmem:[%s5] sm:$0x1]
    %v135 = vlaneseq
    %v136 = vshrl.u32 %v135, 7
    %v137 = vsub.s32 0, %v136
    %v138 = vrot.slane %v133, %v137
    %140 = vmatprep.subr.mxu0 0.0
    %141 = vmatpush1.msra.mxu0 %v132
    %142 = vmatprep.subr.mxu0 0.0
    %143 = vmatpush1.msra.mxu0 %v131
    %144 = vmatprep.subr.mxu0 0.0
    %145 = vmatpush1.msra.mxu0 %v130
    %146 = vmatprep.subr.mxu0 0.0
    %147 = vmatpush1.msra.mxu0 %v129
    %148 = vmatprep.subr.mxu0 0.0
    %149 = vmatpush1.msra.mxu0 %v128
    %150 = vmatprep.subr.mxu0 0.0
    %151 = vmatpush1.msra.mxu0 %v127
    %152 = vmatprep.subr.mxu0 0.0
    %153 = vmatpush1.msra.mxu0 %v126
    %154 = vmatprep.subr.mxu0 0.0
    %155 = vmatpush1.msra.mxu0 %v125
    %156 = vmatprep.subr.mxu0 0.0
    %157 = vmatpush1.msra.mxu0 %v124
    %158 = vmatprep.subr.mxu0 0.0
    %159 = vmatpush1.msra.mxu0 %v123
    %160 = vmatprep.subr.mxu0 0.0
    %161 = vmatpush1.msra.mxu0 %v122
    %162 = vmatprep.subr.mxu0 0.0
    %163 = vmatpush1.msra.mxu0 %v121
    %164 = vmatprep.subr.mxu0 0.0
    %165 = vmatpush1.msra.mxu0 %v120
    %166 = vmatprep.subr.mxu0 0.0
    %167 = vmatpush1.msra.mxu0 %v119
    %168 = vmatprep.subr.mxu0 0.0
    %169 = vmatpush1.msra.mxu0 %v118
    %170 = vmatprep.subr.mxu0 0.0
    %171 = vmatpush1.msra.mxu0 %v117
    %172 = vmatprep.subr.mxu0 0.0
    %173 = vmatpush2.msra.mxu0 0.0
    %174 = vmatprep.subr.mxu0 0.0
    %175 = vmatpush2.msra.mxu0 0.0
    %176 = vmatprep.subr.mxu0 0.0
    %177 = vmatpush2.msra.mxu0 0.0
    %178 = vmatprep.subr.mxu0 0.0
    %179 = vmatpush2.msra.mxu0 0.0
    %180 = vmatprep.subr.mxu0 0.0
    %181 = vmatpush2.msra.mxu0 0.0
    %182 = vmatprep.subr.mxu0 0.0
    %183 = vmatpush2.msra.mxu0 0.0
    %184 = vmatprep.subr.mxu0 0.0
    %185 = vmatpush2.msra.mxu0 0.0
    %186 = vmatprep.subr.mxu0 0.0
    %187 = vmatpush2.msra.mxu0 0.0
    %188 = vmatprep.subr.mxu0 0.0
    %189 = vmatpush2.msra.mxu0 0.0
    %190 = vmatprep.subr.mxu0 0.0
    %191 = vmatpush2.msra.mxu0 0.0
    %192 = vmatprep.subr.mxu0 0.0
    %193 = vmatpush2.msra.mxu0 0.0
    %194 = vmatprep.subr.mxu0 0.0
    %195 = vmatpush2.msra.mxu0 0.0
    %196 = vmatprep.subr.mxu0 0.0
    %197 = vmatpush2.msra.mxu0 0.0
    %198 = vmatprep.subr.mxu0 0.0
    %199 = vmatpush2.msra.mxu0 0.0
    %200 = vmatprep.subr.mxu0 0.0
    %201 = vmatpush2.msra.mxu0 0.0
    %202 = vmatprep.subr.mxu0 0.0
    %203 = vmatpush2.msra.mxu0 0.0
    %204 = vmatprep.mubr.f32.mxu0 0.0
    %205 = vmatmul.mubr.f32.gmra.mxu0 %v116
    %v206 = vpop.f32.mrf.mxu0
    %v207 = vadd.f32 %v138, %v206
    %v208 = vpop.f32.mrf.mxu0
    %209 = vdwg.mxu0
    %v210 = vld [vmem:[%s0] sm:$0xff]
    %v211 = vmul.f32 %v210, %v207
    %v212 = vld [vmem:[%s6] sm:$0xff]
    %v213 = vld [vmem:[%s7] sm:$0xff]
    %214 = vmatprep.subr.mxu0 0.0
    %215 = vmatpush1.xpose.msra.mxu0 0.0
    %216 = vmatprep.subr.mxu0 0.0
    %217 = vmatpush1.xpose.msra.mxu0 0.0
    %218 = vmatprep.subr.mxu0 0.0
    %219 = vmatpush1.xpose.msra.mxu0 0.0
    %220 = vmatprep.subr.mxu0 0.0
    %221 = vmatpush1.xpose.msra.mxu0 0.0
    %222 = vmatprep.subr.mxu0 0.0
    %223 = vmatpush1.xpose.msra.mxu0 0.0
    %224 = vmatprep.subr.mxu0 0.0
    %225 = vmatpush1.xpose.msra.mxu0 0.0
    %226 = vmatprep.subr.mxu0 0.0
    %227 = vmatpush1.xpose.msra.mxu0 0.0
    %228 = vmatprep.subr.mxu0 0.0
    %229 = vmatpush1.xpose.msra.mxu0 0.0
    %230 = vmatprep.subr.mxu0 0.0
    %231 = vmatpush1.xpose.msra.mxu0 0.0
    %232 = vmatprep.subr.mxu0 0.0
    %233 = vmatpush1.xpose.msra.mxu0 0.0
    %234 = vmatprep.subr.mxu0 0.0
    %235 = vmatpush1.xpose.msra.mxu0 0.0
    %236 = vmatprep.subr.mxu0 0.0
    %237 = vmatpush1.xpose.msra.mxu0 0.0
    %238 = vmatprep.subr.mxu0 0.0
    %239 = vmatpush1.xpose.msra.mxu0 0.0
    %240 = vmatprep.subr.mxu0 0.0
    %241 = vmatpush1.xpose.msra.mxu0 0.0
    %242 = vmatprep.subr.mxu0 0.0
    %243 = vmatpush1.xpose.msra.mxu0 0.0
    %244 = vmatprep.subr.mxu0 0.0
    %245 = vmatpush1.xpose.msra.mxu0 %v116
    %246 = vmatprep.subr.mxu0 0.0
    %247 = vmatpush2.xpose.msra.mxu0 0.0
    %248 = vmatprep.subr.mxu0 0.0
    %249 = vmatpush2.xpose.msra.mxu0 0.0
    %250 = vmatprep.subr.mxu0 0.0
    %251 = vmatpush2.xpose.msra.mxu0 0.0
    %252 = vmatprep.subr.mxu0 0.0
    %253 = vmatpush2.xpose.msra.mxu0 0.0
    %254 = vmatprep.subr.mxu0 0.0
    %255 = vmatpush2.xpose.msra.mxu0 0.0
    %256 = vmatprep.subr.mxu0 0.0
    %257 = vmatpush2.xpose.msra.mxu0 0.0
    %258 = vmatprep.subr.mxu0 0.0
    %259 = vmatpush2.xpose.msra.mxu0 0.0
    %260 = vmatprep.subr.mxu0 0.0
    %261 = vmatpush2.xpose.msra.mxu0 0.0
    %262 = vmatprep.subr.mxu0 0.0
    %263 = vmatpush2.xpose.msra.mxu0 0.0
    %264 = vmatprep.subr.mxu0 0.0
    %265 = vmatpush2.xpose.msra.mxu0 0.0
    %266 = vmatprep.subr.mxu0 0.0
    %267 = vmatpush2.xpose.msra.mxu0 0.0
    %268 = vmatprep.subr.mxu0 0.0
    %269 = vmatpush2.xpose.msra.mxu0 0.0
    %270 = vmatprep.subr.mxu0 0.0
    %271 = vmatpush2.xpose.msra.mxu0 0.0
    %272 = vmatprep.subr.mxu0 0.0
    %273 = vmatpush2.xpose.msra.mxu0 0.0
    %274 = vmatprep.subr.mxu0 0.0
    %275 = vmatpush2.xpose.msra.mxu0 0.0
    %276 = vmatprep.subr.mxu0 0.0
    %277 = vmatpush2.xpose.msra.mxu0 0.0
    %278 = vmatprep.mubr.f32.mxu0 0.0
    %279 = vmatmul.mubr.f32.gmra.mxu0 %v213
    %v280 = vpop.f32.mrf.mxu0
    %v281 = vadd.f32 0.0, %v280
    %v282 = vpop.f32.mrf.mxu0
    %283 = vdwg.mxu0
    %vm284 = vcmask 261120
    %v286 = vsel %vm284, %v212, 0
    %v289 = vsel %vm284, %v211, 0
    %291 = vmatprep.subr.mxu0 0.0
    %292 = vmatpush1.xpose.msra.mxu0 0.0
    %293 = vmatprep.subr.mxu0 0.0
    %294 = vmatpush1.xpose.msra.mxu0 0.0
    %295 = vmatprep.subr.mxu0 0.0
    %296 = vmatpush1.xpose.msra.mxu0 0.0
    %297 = vmatprep.subr.mxu0 0.0
    %298 = vmatpush1.xpose.msra.mxu0 0.0
    %299 = vmatprep.subr.mxu0 0.0
    %300 = vmatpush1.xpose.msra.mxu0 0.0
    %301 = vmatprep.subr.mxu0 0.0
    %302 = vmatpush1.xpose.msra.mxu0 0.0
    %303 = vmatprep.subr.mxu0 0.0
    %304 = vmatpush1.xpose.msra.mxu0 0.0
    %305 = vmatprep.subr.mxu0 0.0
    %306 = vmatpush1.xpose.msra.mxu0 0.0
    %307 = vmatprep.subr.mxu0 0.0
    %308 = vmatpush1.xpose.msra.mxu0 0.0
    %309 = vmatprep.subr.mxu0 0.0
    %310 = vmatpush1.xpose.msra.mxu0 0.0
    %311 = vmatprep.subr.mxu0 0.0
    %312 = vmatpush1.xpose.msra.mxu0 0.0
    %313 = vmatprep.subr.mxu0 0.0
    %314 = vmatpush1.xpose.msra.mxu0 0.0
    %315 = vmatprep.subr.mxu0 0.0
    %316 = vmatpush1.xpose.msra.mxu0 0.0
    %317 = vmatprep.subr.mxu0 0.0
    %318 = vmatpush1.xpose.msra.mxu0 0.0
    %319 = vmatprep.subr.mxu0 0.0
    %320 = vmatpush1.xpose.msra.mxu0 0.0
    %321 = vmatprep.subr.mxu0 0.0
    %322 = vmatpush1.xpose.msra.mxu0 %v289
    %323 = vmatprep.subr.mxu0 0.0
    %324 = vmatpush2.xpose.msra.mxu0 0.0
    %325 = vmatprep.subr.mxu0 0.0
    %326 = vmatpush2.xpose.msra.mxu0 0.0
    %327 = vmatprep.subr.mxu0 0.0
    %328 = vmatpush2.xpose.msra.mxu0 0.0
    %329 = vmatprep.subr.mxu0 0.0
    %330 = vmatpush2.xpose.msra.mxu0 0.0
    %331 = vmatprep.subr.mxu0 0.0
    %332 = vmatpush2.xpose.msra.mxu0 0.0
    %333 = vmatprep.subr.mxu0 0.0
    %334 = vmatpush2.xpose.msra.mxu0 0.0
    %335 = vmatprep.subr.mxu0 0.0
    %336 = vmatpush2.xpose.msra.mxu0 0.0
    %337 = vmatprep.subr.mxu0 0.0
    %338 = vmatpush2.xpose.msra.mxu0 0.0
    %339 = vmatprep.subr.mxu0 0.0
    %340 = vmatpush2.xpose.msra.mxu0 0.0
    %341 = vmatprep.subr.mxu0 0.0
    %342 = vmatpush2.xpose.msra.mxu0 0.0
    %343 = vmatprep.subr.mxu0 0.0
    %344 = vmatpush2.xpose.msra.mxu0 0.0
    %345 = vmatprep.subr.mxu0 0.0
    %346 = vmatpush2.xpose.msra.mxu0 0.0
    %347 = vmatprep.subr.mxu0 0.0
    %348 = vmatpush2.xpose.msra.mxu0 0.0
    %349 = vmatprep.subr.mxu0 0.0
    %350 = vmatpush2.xpose.msra.mxu0 0.0
    %351 = vmatprep.subr.mxu0 0.0
    %352 = vmatpush2.xpose.msra.mxu0 0.0
    %353 = vmatprep.subr.mxu0 0.0
    %354 = vmatpush2.xpose.msra.mxu0 0.0
    %355 = vmatprep.mubr.f32.mxu0 0.0
    %356 = vmatmul.mubr.f32.gmra.mxu0 %v286
    %v357 = vpop.f32.mrf.mxu0
    %v358 = vadd.f32 %v281, %v357
    %v359 = vpop.f32.mrf.mxu0
    %360 = vdwg.mxu0
    %v361 = vld [vmem:[%s8] sm:$0xff]
    %363 = vset.pattern.permute.xlu0 0
    %364 = vperm.xlu0 %363, %v361
    %v365 = vpop.permute.xlu0 %364
    %v367 = vadd.f32 %v358, %v365
    %vm368 = vcmask 57344
    %369 = vst.msk [vmem:[#allocation2] sm:$0x1] %vm368, %v367
    // Predicated region
    $region38: #{tpu_custom_call.1} parent=1 // pred_check
      _
    $region39: #{tpu_custom_call.1} parent=1 // pred_check_branch
      %371 = sbr.rel (0) target = $region41
    $region40: #{tpu_custom_call.1} parent=1 // pred_region
      %s373 = ssub.s32 16, 16
      %374 = vsyncadd [#allocation3], %s373
      %s376 = sshll.u32 [#allocation2], 4
      %s377 = int_to_ptr.vmem [resolvable:$true] %s376
      %379 = dma.vmem_to_hbm [thread:$0]  %s377, 16, %s9, [#allocation3]
    $region41: #{tpu_custom_call.1} parent=1 // pred_fallthru
      _
    // Predicated region
    $region42: #{tpu_custom_call.1} parent=1 // pred_check
      _
    $region43: #{tpu_custom_call.1} parent=1 // pred_check_branch
      %381 = sbr.rel (0) target = $region45
    $region44: #{tpu_custom_call.1} parent=1 // pred_region
      %382 = dma.done [#allocation3], 16
    $region45: #{tpu_custom_call.1} parent=1 // pred_fallthru
      _
    %383 = vsyncpa [#allocation3], 1

</llo_original>
